<compile_context>
chip_gen: v7x
topology: tpu7x:2x2x1
jax: 0.10.0
libtpu: 0.0.40
codegen_flags: <defaults>
</compile_context>

<pallas_src>
import math

import jax
import jax.numpy as jnp
from jax.experimental import pallas as pl
from jax.experimental.pallas import tpu as pltpu


def _round_up(x, m):
    return (x + m - 1) // m * m


def _vmem_capacity_bytes():
    """Physical VMEM of the current chip; conservative fallback (v7x) if unknown."""
    try:
        return int(pltpu.get_tpu_info().vmem_capacity_bytes)
    except Exception:
        return 64 * 1024 * 1024


# ----------------------------------------------------------------------------
# Kernels
# ----------------------------------------------------------------------------
def _ffn_kernel_resident(x_ref, w1_ref, b1_ref, w2_ref, b2_ref, o_ref):
    """Weights fully resident: single hidden chunk, no accumulator needed."""
    h = jnp.dot(x_ref[...], w1_ref[...], preferred_element_type=jnp.float32)
    h = jnp.maximum(h + b1_ref[...], 0.0)
    # TODO(synk): dropout omitted (eval-mode identity); pltpu.prng_* could add training mode.
    y = jnp.dot(h.astype(w2_ref.dtype), w2_ref[...],
                preferred_element_type=jnp.float32)
    o_ref[...] = (y + b2_ref[...]).astype(o_ref.dtype)


def _ffn_kernel_stream_direct(x_ref, w1_ref, b1_ref, w2_ref, b2_ref, o_ref):
    """Streamed hidden chunks, f32 output: accumulate directly into the resident
    output block (saves the f32 scratch + finalize copy)."""
    k = pl.program_id(1)

    @pl.when(k == 0)
    def _():
        o_ref[...] = jnp.broadcast_to(b2_ref[...], o_ref.shape).astype(o_ref.dtype)

    h = jnp.dot(x_ref[...], w1_ref[...], preferred_element_type=jnp.float32)
    h = jnp.maximum(h + b1_ref[...], 0.0)
    o_ref[...] += jnp.dot(h.astype(w2_ref.dtype), w2_ref[...],
                          preferred_element_type=jnp.float32)


def _ffn_kernel_stream_acc(x_ref, w1_ref, b1_ref, w2_ref, b2_ref, o_ref, acc_ref):
    """Streamed hidden chunks, narrow output dtype: f32 accumulator scratch."""
    k = pl.program_id(1)

    @pl.when(k == 0)
    def _():
        acc_ref[...] = jnp.zeros_like(acc_ref)

    h = jnp.dot(x_ref[...], w1_ref[...], preferred_element_type=jnp.float32)
    h = jnp.maximum(h + b1_ref[...], 0.0)
    acc_ref[...] += jnp.dot(h.astype(w2_ref.dtype), w2_ref[...],
                            preferred_element_type=jnp.float32)

    @pl.when(k == pl.num_programs(1) - 1)
    def _():
        o_ref[...] = (acc_ref[...] + b2_ref[...]).astype(o_ref.dtype)


# ----------------------------------------------------------------------------
# Tiling / VMEM planning
# ----------------------------------------------------------------------------
def _choose_tiles(rows, idim_p, hidden_p, c_itemsize, out_dtype, budget,
                  tm_req=None, th_req=None):
    out_itemsize = jnp.dtype(out_dtype).itemsize
    out_is_f32 = jnp.dtype(out_dtype) == jnp.dtype(jnp.float32)

    def footprint(tm, th):
        n_k = hidden_p // th
        direct = (n_k == 1) or out_is_f32
        fp = 2 * tm * idim_p * c_itemsize                      # x tile (dbl buf)
        fp += 2 * 2 * idim_p * th * c_itemsize                 # W1 + W2 chunks
        fp += 2 * 8 * (th + idim_p) * 4                        # biases (sublane-padded)
        fp += 2 * tm * idim_p * out_itemsize                   # out tile
        if not direct:
            fp += tm * idim_p * 4                              # f32 acc scratch
        return fp

    def tm_candidates():
        cap_rows = _round_up(max(rows, 1), 16)
        cands = []
        for t in (1024, 512, 256, 128, 64, 32, 16):
            t = min(t, cap_rows)
            # Keep >= 2 row tiles once there is real work, so v7x's two
            # TensorCores both get a share of the "parallel" axis.
            if rows > 512 and (rows + t - 1) // t < 2:
                t = _round_up((rows + 1) // 2, 16)
            if t not in cands:
                cands.append(t)
        return cands

    if th_req is not None:
        th_req = min(_round_up(th_req, 128), hidden_p)
        if hidden_p % th_req:
            th_req = hidden_p
        th_list = [th_req]
    else:
        # Resident weights first (dominant win), then large streamed chunks.
        th_list = [hidden_p] + [t for t in (2048, 1024, 512, 256, 128)
                                if t < hidden_p and hidden_p % t == 0]

    if tm_req is not None:
        tm_list = [min(_round_up(tm_req, 16), _round_up(max(rows, 1), 16))]
    else:
        tm_list = tm_candidates()

    for th in th_list:
        for tm in tm_list:
            fp = footprint(tm, th)
            if fp <= budget or (tm_req is not None and th_req is not None):
                return tm, th, fp
    tm, th = tm_list[-1], th_list[-1]
    return tm, th, footprint(tm, th)


# ----------------------------------------------------------------------------
# Host-side wrappers
# ----------------------------------------------------------------------------
def prepare_ffn_params(w1, b1, w2, b2, *, compute_dtype=jnp.bfloat16):
    """Pad + cast the (static) weights once, outside the per-call hot path.

    Zero padding is exact: padded hidden units give relu(0 + 0) = 0 against
    zero W2 rows, and padded output columns are sliced off.
    """
    idim, hidden = w1.shape
    idim_p = _round_up(idim, 128)
    hidden_p = _round_up(hidden, 128)
    w1p = jnp.pad(w1.astype(compute_dtype),
                  ((0, idim_p - idim), (0, hidden_p - hidden)))
    w2p = jnp.pad(w2.astype(compute_dtype),
                  ((0, hidden_p - hidden), (0, idim_p - idim)))
    b1p = jnp.pad(b1.astype(jnp.float32), ((0, hidden_p - hidden),)).reshape(1, hidden_p)
    b2p = jnp.pad(b2.astype(jnp.float32), ((0, idim_p - idim),)).reshape(1, idim_p)
    return dict(w1=w1p, b1=b1p, w2=w2p, b2=b2p,
                idim=idim, hidden=hidden, idim_p=idim_p, hidden_p=hidden_p,
                compute_dtype=jnp.dtype(compute_dtype))


def apply_ffn(x, params, *, tm=None, th=None):
    """y = relu(x @ W1 + b1) @ W2 + b2 for x of shape (..., idim)."""
    idim = params["idim"]
    if x.shape[-1] != idim:
        raise ValueError(f"last dim of x ({x.shape[-1]}) != idim ({idim})")
    lead = x.shape[:-1]
    rows = math.prod(lead) if lead else 1

    idim_p, hidden_p = params["idim_p"], params["hidden_p"]
    cdt = params["compute_dtype"]
    c_itemsize = jnp.dtype(cdt).itemsize
    out_dtype = x.dtype
    out_itemsize = jnp.dtype(out_dtype).itemsize

    cap = _vmem_capacity_bytes()
    budget = int(cap * 0.75)
    tm_sel, th_sel, fp = _choose_tiles(rows, idim_p, hidden_p, c_itemsize,
                                       out_dtype, budget, tm, th)

    rows_p = _round_up(max(rows, 1), tm_sel)
    n_i = rows_p // tm_sel
    n_k = hidden_p // th_sel

    # Per-call work: only x gets padded/cast (weights were prepared once).
    x2d = x.reshape(rows, idim).astype(cdt)
    if rows_p != rows or idim_p != idim:
        x2d = jnp.pad(x2d, ((0, rows_p - rows), (0, idim_p - idim)))

    w1p, b1p, w2p, b2p = params["w1"], params["b1"], params["w2"], params["b2"]

    # Advisory cost: weights are fetched once if resident, once per row tile if streamed.
    w_reads = 1 if n_k == 1 else n_i
    cost = pl.CostEstimate(
        flops=4 * rows * idim * params["hidden"],
        transcendentals=0,
        bytes_accessed=int(x2d.size * c_itemsize
                           + (w1p.size + w2p.size) * c_itemsize * w_reads
                           + b1p.size * 4 * w_reads + b2p.size * 4
                           + rows_p * idim_p * out_itemsize),
    )

    # VMEM limit derived from the actual tile footprint, capped by this chip's capacity.
    vmem_limit = max(2 * fp, 32 * 1024 * 1024)
    vmem_limit = min(vmem_limit, int(cap * 0.9))
    vmem_limit = max(vmem_limit, min(fp + 2 * 1024 * 1024, int(cap * 0.95)))

    if n_k == 1:
        # Resident-weight fast path: constant weight block index -> W1/W2 DMA'd once.
        out2d = pl.pallas_call(
            _ffn_kernel_resident,
            out_shape=jax.ShapeDtypeStruct((rows_p, idim_p), out_dtype),
            grid_spec=pltpu.PrefetchScalarGridSpec(
                num_scalar_prefetch=0,
                grid=(n_i,),
                in_specs=[
                    pl.BlockSpec((tm_sel, idim_p), lambda i: (i, 0)),   # x row tile
                    pl.BlockSpec((idim_p, th_sel), lambda i: (0, 0)),   # W1 (resident)
                    pl.BlockSpec((1, th_sel), lambda i: (0, 0)),        # b1
                    pl.BlockSpec((th_sel, idim_p), lambda i: (0, 0)),   # W2 (resident)
                    pl.BlockSpec((1, idim_p), lambda i: (0, 0)),        # b2
                ],
                out_specs=pl.BlockSpec((tm_sel, idim_p), lambda i: (i, 0)),
            ),
            compiler_params=pltpu.CompilerParams(
                dimension_semantics=("parallel",),
                vmem_limit_bytes=int(vmem_limit)),
            cost_estimate=cost,
        )(x2d, w1p, b1p, w2p, b2p)
    else:
        # Streamed weights: hidden chunks on an "arbitrary" reduction axis.
        # TODO(synk): if xprof shows exposed W1/W2 DMA here, add
        # pipeline_mode=pl.Buffered(3) on the two weight BlockSpecs.
        direct = jnp.dtype(out_dtype) == jnp.dtype(jnp.float32)
        kernel = _ffn_kernel_stream_direct if direct else _ffn_kernel_stream_acc
        scratch = [] if direct else [pltpu.VMEM((tm_sel, idim_p), jnp.float32)]
        out2d = pl.pallas_call(
            kernel,
            out_shape=jax.ShapeDtypeStruct((rows_p, idim_p), out_dtype),
            grid_spec=pltpu.PrefetchScalarGridSpec(
                num_scalar_prefetch=0,
                grid=(n_i, n_k),
                in_specs=[
                    pl.BlockSpec((tm_sel, idim_p), lambda i, k: (i, 0)),   # x row tile
                    pl.BlockSpec((idim_p, th_sel), lambda i, k: (0, k)),   # W1 chunk
                    pl.BlockSpec((1, th_sel), lambda i, k: (0, k)),        # b1 chunk
                    pl.BlockSpec((th_sel, idim_p), lambda i, k: (k, 0)),   # W2 chunk
                    pl.BlockSpec((1, idim_p), lambda i, k: (0, 0)),        # b2
                ],
                out_specs=pl.BlockSpec((tm_sel, idim_p), lambda i, k: (i, 0)),
                scratch_shapes=scratch,
            ),
            compiler_params=pltpu.CompilerParams(
                dimension_semantics=("parallel", "arbitrary"),
                vmem_limit_bytes=int(vmem_limit)),
            cost_estimate=cost,
        )(x2d, w1p, b1p, w2p, b2p)

    return out2d[:rows, :idim].reshape(*lead, idim)


def positionwise_feed_forward(x, w1, b1, w2, b2, *, compute_dtype=jnp.bfloat16,
                              tm=None, th=None):
    """One-shot convenience wrapper (prefer prepare_ffn_params + apply_ffn in loops)."""
    params = prepare_ffn_params(w1, b1, w2, b2, compute_dtype=compute_dtype)
    return apply_ffn(x, params, tm=tm, th=th)


def init_params(key, idim, hidden):
    """Deterministic init mimicking torch.nn.Linear defaults (uniform +-1/sqrt(fan_in))."""
    k1, k2, k3, k4 = jax.random.split(key, 4)
    bound1 = 1.0 / math.sqrt(idim)
    bound2 = 1.0 / math.sqrt(hidden)
    # Stored already-transposed for row-major matmul: w1 is (idim, hidden).
    w1 = jax.random.uniform(k1, (idim, hidden), jnp.float32, -bound1, bound1)
    b1 = jax.random.uniform(k2, (hidden,), jnp.float32, -bound1, bound1)
    w2 = jax.random.uniform(k3, (hidden, idim), jnp.float32, -bound2, bound2)
    b2 = jax.random.uniform(k4, (idim,), jnp.float32, -bound2, bound2)
    return w1, b1, w2, b2


if __name__ == "__main__":
    key = jax.random.PRNGKey(0)
    kx, kp = jax.random.split(key)

    # Small shapes consistent with the module.
    batch, seq, idim, hidden = 2, 8, 32, 64
    x = jax.random.normal(kx, (batch, seq, idim), jnp.float32)
    w1, b1, w2, b2 = init_params(kp, idim, hidden)
    ref = jnp.maximum(x @ w1 + b1, 0.0) @ w2 + b2

    # 1) Default bf16-MXU, weights-resident fast path (pad/cast hoisted once).
    params = prepare_ffn_params(w1, b1, w2, b2)
    out = jax.block_until_ready(apply_ffn(x, params))
    assert out.shape == (batch, seq, idim)
    assert jnp.allclose(out, ref, atol=3e-2, rtol=3e-2), float(jnp.max(jnp.abs(out - ref)))

    # 2) f32-MXU option (strict-parity path from the correctness review).
    params32 = prepare_ffn_params(w1, b1, w2, b2, compute_dtype=jnp.float32)
    out32 = jax.block_until_ready(apply_ffn(x, params32))
    assert jnp.allclose(out32, ref, atol=3e-2, rtol=3e-2), float(jnp.max(jnp.abs(out32 - ref)))

    # 3) Streamed-weights path (forced small hidden chunk), f32 output ->
    #    direct accumulation into the resident output block.
    idim2, hidden2 = 64, 256
    w1b, b1b, w2b, b2b = init_params(jax.random.PRNGKey(1), idim2, hidden2)
    x2 = jax.random.normal(jax.random.PRNGKey(2), (batch, seq, idim2), jnp.float32)
    ref2 = jnp.maximum(x2 @ w1b + b1b, 0.0) @ w2b + b2b
    p2 = prepare_ffn_params(w1b, b1b, w2b, b2b)
    out2 = jax.block_until_ready(apply_ffn(x2, p2, th=128))   # hidden_p=256 -> 2 k-steps
    assert jnp.allclose(out2, ref2, atol=3e-2, rtol=3e-2), float(jnp.max(jnp.abs(out2 - ref2)))

    # 4) Streamed path with bf16 output -> f32 accumulator scratch path.
    x2b = x2.astype(jnp.bfloat16)
    ref2b = jnp.maximum(x2b.astype(jnp.float32) @ w1b + b1b, 0.0) @ w2b + b2b
    out3 = jax.block_until_ready(apply_ffn(x2b, p2, th=128))
    assert jnp.allclose(out3.astype(jnp.float32), ref2b, atol=6e-2, rtol=6e-2), \
        float(jnp.max(jnp.abs(out3.astype(jnp.float32) - ref2b)))

    print("KERNEL_OK")
</pallas_src>

<mosaic_0001>
module attributes {stable_mosaic.version = 11 : i64} {
  func.func @_ffn_kernel_resident(%arg0: i32, %arg1: memref<16x128xbf16, #tpu.memory_space<vmem>>, %arg2: memref<128x128xbf16, #tpu.memory_space<vmem>>, %arg3: memref<1x128xf32, #tpu.memory_space<vmem>>, %arg4: memref<128x128xbf16, #tpu.memory_space<vmem>>, %arg5: memref<1x128xf32, #tpu.memory_space<vmem>>, %arg6: memref<16x128xf32, #tpu.memory_space<vmem>>) attributes {dimension_semantics = [#tpu.dimension_semantics<parallel>], iteration_bounds = array<i64: 1>, scalar_prefetch = 0 : i64, scratch_operands = 0 : i64, tpu.core_type = #tpu.core_type<tc>, window_params = [{transform_indices = @transform_0, window_bounds = array<i64: 16, 128>}, {pipeline_mode = #tpu.pipeline_mode<synchronous>, transform_indices = @transform_1, window_bounds = array<i64: 128, 128>}, {pipeline_mode = #tpu.pipeline_mode<synchronous>, transform_indices = @transform_2, window_bounds = array<i64: 1, 128>}, {pipeline_mode = #tpu.pipeline_mode<synchronous>, transform_indices = @transform_3, window_bounds = array<i64: 128, 128>}, {pipeline_mode = #tpu.pipeline_mode<synchronous>, transform_indices = @transform_4, window_bounds = array<i64: 1, 128>}, {transform_indices = @transform_5, window_bounds = array<i64: 16, 128>}]} {
    %c0 = arith.constant 0 : index
    %c0_0 = arith.constant 0 : index
    %0 = vector.load %arg1[%c0, %c0_0] : memref<16x128xbf16, #tpu.memory_space<vmem>>, vector<16x128xbf16>
    %c0_1 = arith.constant 0 : index
    %c0_2 = arith.constant 0 : index
    %1 = vector.load %arg2[%c0_1, %c0_2] : memref<128x128xbf16, #tpu.memory_space<vmem>>, vector<128x128xbf16>
    %cst = arith.constant dense<0.000000e+00> : vector<16x128xf32>
    %2 = tpu.matmul %0, %1, %cst {dimension_numbers = #tpu.dot_dimension_numbers<[1], [0], [0], [1], [0, 0, 1, 1], [], []>} : vector<16x128xbf16>, vector<128x128xbf16>, vector<16x128xf32> -> vector<16x128xf32>
    %c0_3 = arith.constant 0 : index
    %c0_4 = arith.constant 0 : index
    %3 = vector.load %arg3[%c0_3, %c0_4] : memref<1x128xf32, #tpu.memory_space<vmem>>, vector<1x128xf32>
    %4 = vector.broadcast %3 : vector<1x128xf32> to vector<16x128xf32>
    %5 = arith.addf %2, %4 : vector<16x128xf32>
    %cst_5 = arith.constant 0.000000e+00 : f32
    %6 = vector.broadcast %cst_5 : f32 to vector<16x128xf32>
    %7 = arith.maximumf %5, %6 : vector<16x128xf32>
    %8 = arith.truncf %7 : vector<16x128xf32> to vector<16x128xbf16>
    %c0_6 = arith.constant 0 : index
    %c0_7 = arith.constant 0 : index
    %9 = vector.load %arg4[%c0_6, %c0_7] : memref<128x128xbf16, #tpu.memory_space<vmem>>, vector<128x128xbf16>
    %cst_8 = arith.constant dense<0.000000e+00> : vector<16x128xf32>
    %10 = tpu.matmul %8, %9, %cst_8 {dimension_numbers = #tpu.dot_dimension_numbers<[1], [0], [0], [1], [0, 0, 1, 1], [], []>} : vector<16x128xbf16>, vector<128x128xbf16>, vector<16x128xf32> -> vector<16x128xf32>
    %c0_9 = arith.constant 0 : index
    %c0_10 = arith.constant 0 : index
    %11 = vector.load %arg5[%c0_9, %c0_10] : memref<1x128xf32, #tpu.memory_space<vmem>>, vector<1x128xf32>
    %12 = vector.broadcast %11 : vector<1x128xf32> to vector<16x128xf32>
    %13 = arith.addf %10, %12 : vector<16x128xf32>
    %c0_11 = arith.constant 0 : index
    %c0_12 = arith.constant 0 : index
    %14 = vector.load %arg6[%c0_11, %c0_12] : memref<16x128xf32, #tpu.memory_space<vmem>>, vector<16x128xf32>
    tpu.vector_store %arg6[%c0_11, %c0_12], %13 {strides = array<i32>} : memref<16x128xf32, #tpu.memory_space<vmem>>, vector<16x128xf32>,
    return
  }
  func.func @transform_0(%arg0: i32) -> (i32, i32) {
    %c0_i32 = arith.constant 0 : i32
    %c0_i32_0 = arith.constant 0 : i32
    return %arg0, %c0_i32 : i32, i32
  }
  func.func @transform_1(%arg0: i32) -> (i32, i32) {
    %c0_i32 = arith.constant 0 : i32
    %c0_i32_0 = arith.constant 0 : i32
    %c0_i32_1 = arith.constant 0 : i32
    return %c0_i32, %c0_i32_0 : i32, i32
  }
  func.func @transform_2(%arg0: i32) -> (i32, i32) {
    %c0_i32 = arith.constant 0 : i32
    %c0_i32_0 = arith.constant 0 : i32
    %c0_i32_1 = arith.constant 0 : i32
    return %c0_i32, %c0_i32_0 : i32, i32
  }
  func.func @transform_3(%arg0: i32) -> (i32, i32) {
    %c0_i32 = arith.constant 0 : i32
    %c0_i32_0 = arith.constant 0 : i32
    %c0_i32_1 = arith.constant 0 : i32
    return %c0_i32, %c0_i32_0 : i32, i32
  }
  func.func @transform_4(%arg0: i32) -> (i32, i32) {
    %c0_i32 = arith.constant 0 : i32
    %c0_i32_0 = arith.constant 0 : i32
    %c0_i32_1 = arith.constant 0 : i32
    return %c0_i32, %c0_i32_0 : i32, i32
  }
  func.func @transform_5(%arg0: i32) -> (i32, i32) {
    %c0_i32 = arith.constant 0 : i32
    %c0_i32_0 = arith.constant 0 : i32
    return %arg0, %c0_i32 : i32, i32
  }
}

</mosaic_0001>

<llo_original>
// kernel: tpu_custom_call.1
$region0: #{tpu_custom_call.1}
  #allocation0 [shape = 'u32[]', space=smem, size = 0x4, offset = 0x4, fixed_abs, tag = 'smem constant byte address 0x4 - core index']
  #allocation1 [shape = 'u32[144,128]{1,0:T(1,128)}', space=vmem, size = 0x12000, scoped, tag = 'internal scratch']
  %s0 = inlined_call_operand.hbm [shape: bf16[16,128], index: 0, kind: input, shape index: {}]
  %s1 = inlined_call_operand.hbm [shape: bf16[128,128], index: 1, kind: input, shape index: {}]
  %s2 = inlined_call_operand.vmem [shape: f32[1,128], index: 2, kind: input, shape index: {}]
  %s3 = inlined_call_operand.hbm [shape: bf16[128,128], index: 3, kind: input, shape index: {}]
  %s4 = inlined_call_operand.vmem [shape: f32[1,128], index: 4, kind: input, shape index: {}]
  %s5 = inlined_call_operand.hbm [shape: f32[16,128], index: 5, kind: output, shape index: {}]
  %s6 = sld [smem:[#allocation0]]
  $region42: #{tpu_custom_call.1} parent=0
    _
  %s8 = ssub.s32 1, %s6
  %s9 = scalar_select 0, %s8, %s6
  $region1: #{tpu_custom_call.1} parent=0
    #allocation2 [shape = 'u8[4096]{0}', space=vmem, size = 0x1000, scoped, tag = 'input window, operand 0, single buffered']
    #allocation3 [shape = 's32[1]{0}', space=sflag, size = 0x4, scoped, tag = 'scoped memory for tpu_custom_call.1']
    #allocation4 [shape = 's32[1]{0}', space=sflag, size = 0x4, scoped, tag = 'scoped memory for tpu_custom_call.1']
    #allocation5 [shape = 'u8[32768]{0}', space=vmem, size = 0x8000, scoped, tag = 'input window, operand 1, single buffered']
    #allocation6 [shape = 's32[1]{0}', space=sflag, size = 0x4, scoped, tag = 'scoped memory for tpu_custom_call.1']
    #allocation7 [shape = 'u8[32768]{0}', space=vmem, size = 0x8000, scoped, tag = 'input window, operand 3, single buffered']
    #allocation8 [shape = 'u8[8192]{0}', space=vmem, size = 0x2000, scoped, tag = 'output window, operand 0, single buffered']
    %10 = vsyncpa [#allocation3], 0
    %11 = vsyncpa [#allocation6], 0
    %12 = vsyncpa [#allocation4], 0
    // Predicated region
    $region2: #{tpu_custom_call.1} parent=1 // pred_check
      _
    $region3: #{tpu_custom_call.1} parent=1 // pred_check_branch
      %14 = sbr.rel (0) target = $region5
    $region4: #{tpu_custom_call.1} parent=1 // pred_region
      %s16 = ssub.s32 128, 128
      %17 = vsyncadd [#allocation3], %s16
      %s18 = sshll.u32 [#allocation2], 4
      %s19 = int_to_ptr.vmem [resolvable:$true] %s18
      %24 = dma.hbm_to_vmem [thread:$0]  %s0, 128, %s19, [#allocation3], 64, 64, 4
    $region5: #{tpu_custom_call.1} parent=1 // pred_fallthru
      _
    // Predicated region
    $region6: #{tpu_custom_call.1} parent=1 // pred_check
      _
    $region7: #{tpu_custom_call.1} parent=1 // pred_check_branch
      %26 = sbr.rel (0) target = $region9
    $region8: #{tpu_custom_call.1} parent=1 // pred_region
      %s28 = ssub.s32 1024, 1024
      %29 = vsyncadd [#allocation6], %s28
      %s30 = sshll.u32 [#allocation5], 4
      %s31 = int_to_ptr.vmem [resolvable:$true] %s30
      %36 = dma.hbm_to_vmem [thread:$0]  %s1, 1024, %s31, [#allocation6], 64, 64, 4
    $region9: #{tpu_custom_call.1} parent=1 // pred_fallthru
      _
    // Predicated region
    $region10: #{tpu_custom_call.1} parent=1 // pred_check
      _
    $region11: #{tpu_custom_call.1} parent=1 // pred_check_branch
      %38 = sbr.rel (0) target = $region13
    $region12: #{tpu_custom_call.1} parent=1 // pred_region
      _
    $region13: #{tpu_custom_call.1} parent=1 // pred_fallthru
      _
    // Predicated region
    $region14: #{tpu_custom_call.1} parent=1 // pred_check
      _
    $region15: #{tpu_custom_call.1} parent=1 // pred_check_branch
      %40 = sbr.rel (0) target = $region17
    $region16: #{tpu_custom_call.1} parent=1 // pred_region
      %s42 = ssub.s32 1024, 1024
      %43 = vsyncadd [#allocation6], %s42
      %s44 = sshll.u32 [#allocation7], 4
      %s45 = int_to_ptr.vmem [resolvable:$true] %s44
      %50 = dma.hbm_to_vmem [thread:$0]  %s3, 1024, %s45, [#allocation6], 64, 64, 4
    $region17: #{tpu_custom_call.1} parent=1 // pred_fallthru
      _
    // Predicated region
    $region18: #{tpu_custom_call.1} parent=1 // pred_check
      _
    $region19: #{tpu_custom_call.1} parent=1 // pred_check_branch
      %52 = sbr.rel (0) target = $region21
    $region20: #{tpu_custom_call.1} parent=1 // pred_region
      _
    $region21: #{tpu_custom_call.1} parent=1 // pred_fallthru
      _
    // Predicated region
    $region22: #{tpu_custom_call.1} parent=1 // pred_check
      _
    $region23: #{tpu_custom_call.1} parent=1 // pred_check_branch
      %54 = sbr.rel (0) target = $region25
    $region24: #{tpu_custom_call.1} parent=1 // pred_region
      %55 = dma.done [#allocation3], 128
    $region25: #{tpu_custom_call.1} parent=1 // pred_fallthru
      _
    // Predicated region
    $region26: #{tpu_custom_call.1} parent=1 // pred_check
      _
    $region27: #{tpu_custom_call.1} parent=1 // pred_check_branch
      %57 = sbr.rel (0) target = $region29
    $region28: #{tpu_custom_call.1} parent=1 // pred_region
      %58 = dma.done [#allocation6], 1024
    $region29: #{tpu_custom_call.1} parent=1 // pred_fallthru
      _
    // Predicated region
    $region30: #{tpu_custom_call.1} parent=1 // pred_check
      _
    $region31: #{tpu_custom_call.1} parent=1 // pred_check_branch
      %60 = sbr.rel (0) target = $region33
    $region32: #{tpu_custom_call.1} parent=1 // pred_region
      %61 = dma.done [#allocation6], 1024
    $region33: #{tpu_custom_call.1} parent=1 // pred_fallthru
      _
    %v63 = vld [vmem:[#allocation2] sm:$0xf]
    %v64 = vld [vmem:[#allocation2 + $0x4] sm:$0xf]
    %v65 = vld [vmem:[#allocation5] sm:$0xf]
    %v66 = vld [vmem:[#allocation5 + $0x4] sm:$0xf]
    %v67 = vld [vmem:[#allocation5 + $0x8] sm:$0xf]
    %v68 = vld [vmem:[#allocation5 + $0xc] sm:$0xf]
    %v69 = vld [vmem:[#allocation5 + $0x10] sm:$0xf]
    %v70 = vld [vmem:[#allocation5 + $0x14] sm:$0xf]
    %v71 = vld [vmem:[#allocation5 + $0x18] sm:$0xf]
    %v72 = vld [vmem:[#allocation5 + $0x1c] sm:$0xf]
    %v73 = vld [vmem:[#allocation5 + $0x20] sm:$0xf]
    %v74 = vld [vmem:[#allocation5 + $0x24] sm:$0xf]
    %v75 = vld [vmem:[#allocation5 + $0x28] sm:$0xf]
    %v76 = vld [vmem:[#allocation5 + $0x2c] sm:$0xf]
    %v77 = vld [vmem:[#allocation5 + $0x30] sm:$0xf]
    %v78 = vld [vmem:[#allocation5 + $0x34] sm:$0xf]
    %v79 = vld [vmem:[#allocation5 + $0x38] sm:$0xf]
    %v80 = vld [vmem:[#allocation5 + $0x3c] sm:$0xf]
    %v81 = vld [vmem:[%s2] sm:$0x1]
    %v83 = vlaneseq
    %v84 = vshrl.u32 %v83, 7
    %v85 = vsub.s32 0, %v84
    %v86 = vrot.slane %v81, %v85
    %v90 = vunpack.c.l.b16 %v63
    %v91 = vunpack.c.l.b16 %v64
    %v92 = vpack.c.b16 %v91, %v90
    %v110 = vunpack.c.l.b16 %v65
    %v111 = vunpack.c.l.b16 %v66
    %v112 = vunpack.c.l.b16 %v67
    %v113 = vunpack.c.l.b16 %v68
    %v114 = vunpack.c.l.b16 %v69
    %v115 = vunpack.c.l.b16 %v70
    %v116 = vunpack.c.l.b16 %v71
    %v117 = vunpack.c.l.b16 %v72
    %v118 = vunpack.c.l.b16 %v73
    %v119 = vunpack.c.l.b16 %v74
    %v120 = vunpack.c.l.b16 %v75
    %v121 = vunpack.c.l.b16 %v76
    %v122 = vunpack.c.l.b16 %v77
    %v123 = vunpack.c.l.b16 %v78
    %v124 = vunpack.c.l.b16 %v79
    %v125 = vunpack.c.l.b16 %v80
    %v126 = vpack.c.b16 %v111, %v110
    %v127 = vpack.c.b16 %v113, %v112
    %v128 = vpack.c.b16 %v115, %v114
    %v129 = vpack.c.b16 %v117, %v116
    %v130 = vpack.c.b16 %v119, %v118
    %v131 = vpack.c.b16 %v121, %v120
    %v132 = vpack.c.b16 %v123, %v122
    %v133 = vpack.c.b16 %v125, %v124
    %142 = vmatprep.subr.bf16.mxu0 0
    %143 = vmatpush1.bf16.msra.mxu0 %v126
    %144 = vmatprep.subr.bf16.mxu0 0
    %145 = vmatpush1.bf16.msra.mxu0 %v127
    %146 = vmatprep.subr.bf16.mxu0 0
    %147 = vmatpush1.bf16.msra.mxu0 %v128
    %148 = vmatprep.subr.bf16.mxu0 0
    %149 = vmatpush1.bf16.msra.mxu0 %v129
    %150 = vmatprep.subr.bf16.mxu0 0
    %151 = vmatpush1.bf16.msra.mxu0 %v130
    %152 = vmatprep.subr.bf16.mxu0 0
    %153 = vmatpush1.bf16.msra.mxu0 %v131
    %154 = vmatprep.subr.bf16.mxu0 0
    %155 = vmatpush1.bf16.msra.mxu0 %v132
    %156 = vmatprep.subr.bf16.mxu0 0
    %157 = vmatpush1.bf16.msra.mxu0 %v133
    %158 = vmatprep.subr.bf16.mxu0 0
    %159 = vmatpush1.bf16.msra.mxu0 0
    %160 = vmatprep.subr.bf16.mxu0 0
    %161 = vmatpush1.bf16.msra.mxu0 0
    %162 = vmatprep.subr.bf16.mxu0 0
    %163 = vmatpush1.bf16.msra.mxu0 0
    %164 = vmatprep.subr.bf16.mxu0 0
    %165 = vmatpush1.bf16.msra.mxu0 0
    %166 = vmatprep.subr.bf16.mxu0 0
    %167 = vmatpush1.bf16.msra.mxu0 0
    %168 = vmatprep.subr.bf16.mxu0 0
    %169 = vmatpush1.bf16.msra.mxu0 0
    %170 = vmatprep.subr.bf16.mxu0 0
    %171 = vmatpush1.bf16.msra.mxu0 0
    %172 = vmatprep.subr.bf16.mxu0 0
    %173 = vmatpush1.bf16.msra.mxu0 0
    %174 = vmatprep.mubr.bf16.mxu0 0
    %175 = vmatmul.mubr.bf16.gmra.mrb[0].mxu0 %v92
    %v176 = vpop.f32.mrb[0].mxu0
    %v177 = vadd.f32 %v86, %v176
    %v178 = vpop.f32.mrb[0].mxu0
    %v179 = vpop.f32.mrb[0].mxu0
    %v180 = vadd.f32 %v86, %v179
    %v181 = vpop.f32.mrb[0].mxu0
    %182 = vdwg.mxu0
    %v183 = vmax.f32 %v177, 0.0
    %v184 = vmax.f32 %v180, 0.0
    %v185 = vpack.c.bf16 %v184, %v183
    %v186 = vld [vmem:[#allocation7] sm:$0xf]
    %v187 = vld [vmem:[#allocation7 + $0x4] sm:$0xf]
    %v188 = vld [vmem:[#allocation7 + $0x8] sm:$0xf]
    %v189 = vld [vmem:[#allocation7 + $0xc] sm:$0xf]
    %v190 = vld [vmem:[#allocation7 + $0x10] sm:$0xf]
    %v191 = vld [vmem:[#allocation7 + $0x14] sm:$0xf]
    %v192 = vld [vmem:[#allocation7 + $0x18] sm:$0xf]
    %v193 = vld [vmem:[#allocation7 + $0x1c] sm:$0xf]
    %v194 = vld [vmem:[#allocation7 + $0x20] sm:$0xf]
    %v195 = vld [vmem:[#allocation7 + $0x24] sm:$0xf]
    %v196 = vld [vmem:[#allocation7 + $0x28] sm:$0xf]
    %v197 = vld [vmem:[#allocation7 + $0x2c] sm:$0xf]
    %v198 = vld [vmem:[#allocation7 + $0x30] sm:$0xf]
    %v199 = vld [vmem:[#allocation7 + $0x34] sm:$0xf]
    %v200 = vld [vmem:[#allocation7 + $0x38] sm:$0xf]
    %v201 = vld [vmem:[#allocation7 + $0x3c] sm:$0xf]
    %v202 = vld [vmem:[%s4] sm:$0x1]
    %v204 = vlaneseq
    %v205 = vshrl.u32 %v204, 7
    %v206 = vsub.s32 0, %v205
    %v207 = vrot.slane %v202, %v206
    %v225 = vunpack.c.l.b16 %v186
    %v226 = vunpack.c.l.b16 %v187
    %v227 = vunpack.c.l.b16 %v188
    %v228 = vunpack.c.l.b16 %v189
    %v229 = vunpack.c.l.b16 %v190
    %v230 = vunpack.c.l.b16 %v191
    %v231 = vunpack.c.l.b16 %v192
    %v232 = vunpack.c.l.b16 %v193
    %v233 = vunpack.c.l.b16 %v194
    %v234 = vunpack.c.l.b16 %v195
    %v235 = vunpack.c.l.b16 %v196
    %v236 = vunpack.c.l.b16 %v197
    %v237 = vunpack.c.l.b16 %v198
    %v238 = vunpack.c.l.b16 %v199
    %v239 = vunpack.c.l.b16 %v200
    %v240 = vunpack.c.l.b16 %v201
    %v241 = vpack.c.b16 %v226, %v225
    %v242 = vpack.c.b16 %v228, %v227
    %v243 = vpack.c.b16 %v230, %v229
    %v244 = vpack.c.b16 %v232, %v231
    %v245 = vpack.c.b16 %v234, %v233
    %v246 = vpack.c.b16 %v236, %v235
    %v247 = vpack.c.b16 %v238, %v237
    %v248 = vpack.c.b16 %v240, %v239
    %257 = vmatprep.subr.bf16.mxu0 0
    %258 = vmatpush1.bf16.msra.mxu0 %v241
    %259 = vmatprep.subr.bf16.mxu0 0
    %260 = vmatpush1.bf16.msra.mxu0 %v242
    %261 = vmatprep.subr.bf16.mxu0 0
    %262 = vmatpush1.bf16.msra.mxu0 %v243
    %263 = vmatprep.subr.bf16.mxu0 0
    %264 = vmatpush1.bf16.msra.mxu0 %v244
    %265 = vmatprep.subr.bf16.mxu0 0
    %266 = vmatpush1.bf16.msra.mxu0 %v245
    %267 = vmatprep.subr.bf16.mxu0 0
    %268 = vmatpush1.bf16.msra.mxu0 %v246
    %269 = vmatprep.subr.bf16.mxu0 0
    %270 = vmatpush1.bf16.msra.mxu0 %v247
    %271 = vmatprep.subr.bf16.mxu0 0
    %272 = vmatpush1.bf16.msra.mxu0 %v248
    %273 = vmatprep.subr.bf16.mxu0 0
    %274 = vmatpush1.bf16.msra.mxu0 0
    %275 = vmatprep.subr.bf16.mxu0 0
    %276 = vmatpush1.bf16.msra.mxu0 0
    %277 = vmatprep.subr.bf16.mxu0 0
    %278 = vmatpush1.bf16.msra.mxu0 0
    %279 = vmatprep.subr.bf16.mxu0 0
    %280 = vmatpush1.bf16.msra.mxu0 0
    %281 = vmatprep.subr.bf16.mxu0 0
    %282 = vmatpush1.bf16.msra.mxu0 0
    %283 = vmatprep.subr.bf16.mxu0 0
    %284 = vmatpush1.bf16.msra.mxu0 0
    %285 = vmatprep.subr.bf16.mxu0 0
    %286 = vmatpush1.bf16.msra.mxu0 0
    %287 = vmatprep.subr.bf16.mxu0 0
    %288 = vmatpush1.bf16.msra.mxu0 0
    %289 = vmatprep.mubr.bf16.mxu0 0
    %290 = vmatmul.mubr.bf16.gmra.mrb[0].mxu0 %v185
    %v291 = vpop.f32.mrb[0].mxu0
    %v292 = vadd.f32 %v207, %v291
    %v293 = vpop.f32.mrb[0].mxu0
    %v294 = vpop.f32.mrb[0].mxu0
    %v295 = vadd.f32 %v207, %v294
    %v296 = vpop.f32.mrb[0].mxu0
    %297 = vdwg.mxu0
    %298 = vst [vmem:[#allocation8] sm:$0xff] %v292
    %299 = vst [vmem:[#allocation8 + $0x8] sm:$0xff] %v295
    // Predicated region
    $region34: #{tpu_custom_call.1} parent=1 // pred_check
      _
    $region35: #{tpu_custom_call.1} parent=1 // pred_check_branch
      %301 = sbr.rel (0) target = $region37
    $region36: #{tpu_custom_call.1} parent=1 // pred_region
      %s303 = ssub.s32 256, 256
      %304 = vsyncadd [#allocation4], %s303
      %s305 = sshll.u32 [#allocation8], 4
      %s306 = int_to_ptr.vmem [resolvable:$true] %s305
      %311 = dma.vmem_to_hbm [thread:$0]  %s306, 256, %s5, [#allocation4], 128, 128, 8
    $region37: #{tpu_custom_call.1} parent=1 // pred_fallthru
      _
    // Predicated region
    $region38: #{tpu_custom_call.1} parent=1 // pred_check
      _
    $region39: #{tpu_custom_call.1} parent=1 // pred_check_branch
      %313 = sbr.rel (0) target = $region41
    $region40: #{tpu_custom_call.1} parent=1 // pred_region
      %314 = dma.done [#allocation4], 256
    $region41: #{tpu_custom_call.1} parent=1 // pred_fallthru
      _
    %315 = vsyncpa [#allocation3], 1
    %316 = vsyncpa [#allocation6], 1
    %317 = vsyncpa [#allocation4], 1

</llo_original>
